<compile_context>
chip_gen: v7x
topology: tpu7x:2x2x1
jax: 0.10.0
libtpu: 0.0.40
codegen_flags: <defaults>
</compile_context>

<pallas_src>
import math

import jax
import jax.numpy as jnp
from jax import lax
from jax.experimental import pallas as pl
from jax.experimental.pallas import tpu as pltpu

_SMOOTH = 1e-5
_LANE = 128                        # vreg lane width
_ROW_MULT = 32                     # sublane-row multiple (safe for f32/bf16/int8 tiling)
_MAX_ROWS = 256                    # target rows/block (256*128 = 32K spatial lanes)
_X_BLOCK_BUDGET = 2 * 1024 * 1024  # bytes per x block (Pallas double-buffers it)


def _make_iou_sums_kernel(C, s_sub, M, nonlin):
    """Builds the kernel computing per-(batch, class) partial sums of x*t, x, t.

    Block layout: x (1, C, s_sub, 128), labels (1, 1, s_sub, 128); outputs are
    lane-dense (1, C, 128) partials accumulated across the spatial grid axis.
    """
    blk = s_sub * _LANE
    need_mask = (M % blk) != 0     # last spatial block is ragged -> mask in-kernel

    def kernel(x_ref, lbl_ref, tp_ref, sx_ref, st_ref):
        s = pl.program_id(1)

        @pl.when(s == 0)
        def _():
            tp_ref[...] = jnp.zeros_like(tp_ref)
            sx_ref[...] = jnp.zeros_like(sx_ref)
            st_ref[...] = jnp.zeros_like(st_ref)

        lbl = lbl_ref[0, 0].astype(jnp.int32)                  # (s_sub, 128)

        if need_mask:
            row = lax.broadcasted_iota(jnp.int32, (s_sub, _LANE), 0)
            col = lax.broadcasted_iota(jnp.int32, (s_sub, _LANE), 1)
            valid = (s * s_sub + row) * _LANE + col < M        # vs true element count
            lbl = jnp.where(valid, lbl, -1)

        if nonlin == "softmax":                                # fused over class axis
            xs = x_ref[0].astype(jnp.float32)                  # (C, s_sub, 128)
            mx = jnp.max(xs, axis=0, keepdims=True)
            ex = jnp.exp(xs - mx)                              # EUP
            xs = ex / jnp.sum(ex, axis=0, keepdims=True)

        tp_parts, sx_parts, st_parts = [], [], []
        for c in range(C):                                     # C is small and static
            if nonlin == "softmax":
                xc = xs[c]
            else:
                xc = x_ref[0, c].astype(jnp.float32)           # (s_sub, 128)
                if nonlin == "sigmoid":
                    xc = jax.nn.sigmoid(xc)
            if need_mask:
                xc = jnp.where(valid, xc, 0.0)
            tc = lbl == c                                      # in-kernel one-hot slab
            xt = jnp.where(tc, xc, 0.0)
            # Block-local reduction over the sublane axis (XLU slot); the running
            # accumulators stay a single lane-dense (C, 128) row per quantity.
            tp_parts.append(jnp.sum(xt, axis=0, keepdims=True))
            sx_parts.append(jnp.sum(xc, axis=0, keepdims=True))
            st_parts.append(jnp.sum(tc.astype(jnp.float32), axis=0, keepdims=True))

        tp_ref[0] += jnp.concatenate(tp_parts, axis=0)         # (C, 128)
        sx_ref[0] += jnp.concatenate(sx_parts, axis=0)
        st_ref[0] += jnp.concatenate(st_parts, axis=0)

    return kernel


def iou_loss(x, y, loss_mask=None, *, apply_nonlin=None, batch_dice=False,
             do_bg=True, smooth=_SMOOTH, square=False, block_rows=None):
    """IoULoss.forward.

    x: (N, C, *spatial) scores.  y: (N, *spatial) or (N, 1, *spatial) integer
    labels, or a hard one-hot of x's shape.  apply_nonlin: None, "softmax",
    "sigmoid" (fused in-kernel) or a callable (applied un-fused in the wrapper).
    """
    if loss_mask is not None:
        raise NotImplementedError  # TODO(synk): per-pixel loss_mask weighting
    if square:
        raise NotImplementedError  # TODO(synk): square=True (squared tp/fp/fn) variant

    nonlin = None
    if isinstance(apply_nonlin, str):
        if apply_nonlin not in ("softmax", "sigmoid"):
            raise ValueError(f"unsupported fused nonlinearity: {apply_nonlin}")
        nonlin = apply_nonlin
    elif apply_nonlin is not None:
        # TODO(synk): arbitrary callables run un-fused (extra HBM round trip);
        # pass "softmax"/"sigmoid" to fuse into the kernel.
        x = apply_nonlin(x)

    N, C = int(x.shape[0]), int(x.shape[1])
    M = int(math.prod(x.shape[2:]))

    # --- labels -> (N, M) narrow ints (no one-hot materialization) ---
    if y.shape == x.shape:
        # TODO(synk): assumes a hard one-hot target; soft targets unsupported.
        labels = jnp.argmax(y, axis=1)
    elif y.ndim == x.ndim:
        labels = y[:, 0]
    else:
        labels = y
    lbl_dtype = jnp.int8 if C <= 127 else jnp.int32
    labels = labels.reshape(N, M).astype(lbl_dtype)

    x3 = x.reshape(N, C, M)                 # free contiguous reshape; keep network dtype

    # --- spatial axis -> rows of 128 lanes; pad only when M % 128 != 0 ---
    m128 = ((M + _LANE - 1) // _LANE) * _LANE
    if m128 != M:
        # TODO(synk): this pad copies x in HBM, but only fires when M % 128 != 0;
        # the padded pixels are masked out in-kernel anyway.
        x3 = jnp.pad(x3, ((0, 0), (0, 0), (0, m128 - M)))
        labels = jnp.pad(labels, ((0, 0), (0, m128 - M)), constant_values=-1)
    msub = m128 // _LANE
    x4 = x3.reshape(N, C, msub, _LANE)
    lbl4 = labels.reshape(N, 1, msub, _LANE)

    # --- rows per grid step: big blocks, bounded by a per-block VMEM budget ---
    if block_rows is None:
        itemsize = jnp.dtype(x4.dtype).itemsize
        rows = _X_BLOCK_BUDGET // max(1, C * _LANE * itemsize)
        rows = min(_MAX_ROWS, rows)
    else:
        rows = int(block_rows)
    rows = max(_ROW_MULT, (rows // _ROW_MULT) * _ROW_MULT)
    if msub <= rows:
        s_sub, n_s = msub, 1                # single full-extent block
    else:
        s_sub, n_s = rows, (msub + rows - 1) // rows

    kernel = _make_iou_sums_kernel(C, s_sub, M, nonlin)
    out_sd = jax.ShapeDtypeStruct((N, C, _LANE), jnp.float32)
    out_spec = pl.BlockSpec((1, C, _LANE), lambda b, s: (b, 0, 0))

    # TODO(synk): on v7x (2 TensorCores) add a second "parallel" grid axis that
    # splits the spatial range so N=1 volumes still use both cores.
    tp_p, sx_p, st_p = pl.pallas_call(
        kernel,
        out_shape=(out_sd, out_sd, out_sd),
        grid_spec=pltpu.PrefetchScalarGridSpec(
            num_scalar_prefetch=0,
            grid=(N, n_s),
            in_specs=[
                pl.BlockSpec((1, C, s_sub, _LANE), lambda b, s: (b, 0, s, 0)),
                pl.BlockSpec((1, 1, s_sub, _LANE), lambda b, s: (b, 0, s, 0)),
            ],
            out_specs=(out_spec, out_spec, out_spec),
        ),
        compiler_params=pltpu.CompilerParams(
            dimension_semantics=("parallel", "arbitrary"),
            vmem_limit_bytes=32 * 1024 * 1024,
        ),
    )(x4, lbl4)

    tp = jnp.sum(tp_p, axis=-1)             # (N, C)  sum x*t
    sum_x = jnp.sum(sx_p, axis=-1)          # (N, C)  sum x
    sum_t = jnp.sum(st_p, axis=-1)          # (N, C)  sum t
    denom = sum_x + sum_t - tp              # == tp + fp + fn

    if batch_dice:
        tp, denom = tp.sum(0), denom.sum(0)
    iou = (tp + smooth) / (denom + smooth)
    if not do_bg:
        iou = iou[1:] if batch_dice else iou[:, 1:]
    return 1.0 - iou.mean()


def _reference(x, y, smooth=_SMOOTH, apply_nonlin=None):
    """Pure-JAX IoULoss reference (batch_dice=False, do_bg=True, square=False)."""
    xf = x.astype(jnp.float32)
    if apply_nonlin == "softmax":
        xf = jax.nn.softmax(xf, axis=1)
    elif apply_nonlin == "sigmoid":
        xf = jax.nn.sigmoid(xf)
    C = x.shape[1]
    y1 = jax.nn.one_hot(y.astype(jnp.int32), C, axis=1, dtype=jnp.float32)
    axes = tuple(range(2, x.ndim))
    tp = jnp.sum(xf * y1, axis=axes)
    fp = jnp.sum(xf * (1.0 - y1), axis=axes)
    fn = jnp.sum((1.0 - xf) * y1, axis=axes)
    iou = (tp + smooth) / (tp + fp + fn + smooth)
    return 1.0 - iou.mean()


if __name__ == "__main__":
    key = jax.random.PRNGKey(0)
    k1, k2, k3, k4 = jax.random.split(key, 4)

    # 1) aligned spatial extent (M % 128 == 0), raw scores
    N, C, H, W = 2, 4, 16, 16
    x = jax.random.normal(k1, (N, C, H, W), dtype=jnp.float32)
    y = jax.random.randint(k2, (N, H, W), 0, C, dtype=jnp.int32)
    out = jax.block_until_ready(iou_loss(x, y))
    ref = _reference(x, y)
    assert jnp.allclose(out, ref, atol=1e-5, rtol=1e-5), ("plain", out, ref)

    # 2) fused softmax nonlinearity
    out = jax.block_until_ready(iou_loss(x, y, apply_nonlin="softmax"))
    ref = _reference(x, y, apply_nonlin="softmax")
    assert jnp.allclose(out, ref, atol=1e-5, rtol=1e-5), ("softmax", out, ref)

    # 3) bf16 activations shipped in the network dtype
    out = jax.block_until_ready(iou_loss(x.astype(jnp.bfloat16), y))
    ref = _reference(x.astype(jnp.bfloat16), y)
    assert jnp.allclose(out, ref, atol=1e-4, rtol=1e-4), ("bf16", out, ref)

    # 4) ragged spatial extent + multi-step spatial reduction (in-kernel tail mask)
    N2, C2, H2, W2 = 2, 3, 91, 93           # M = 8463, not a multiple of 128
    x2 = jax.random.normal(k3, (N2, C2, H2, W2), dtype=jnp.float32)
    y2 = jax.random.randint(k4, (N2, H2, W2), 0, C2, dtype=jnp.int32)
    out = jax.block_until_ready(iou_loss(x2, y2, block_rows=32))
    ref = _reference(x2, y2)
    assert jnp.allclose(out, ref, atol=1e-5, rtol=1e-5), ("ragged", out, ref)

    print("KERNEL_OK")
</pallas_src>

<mosaic_0001>
module attributes {stable_mosaic.version = 11 : i64} {
  func.func @kernel(%arg0: i32, %arg1: i32, %arg2: memref<1x4x2x128xf32, #tpu.memory_space<vmem>>, %arg3: memref<1x1x2x128xi8, #tpu.memory_space<vmem>>, %arg4: memref<1x4x128xf32, #tpu.memory_space<vmem>>, %arg5: memref<1x4x128xf32, #tpu.memory_space<vmem>>, %arg6: memref<1x4x128xf32, #tpu.memory_space<vmem>>) attributes {dimension_semantics = [#tpu.dimension_semantics<parallel>, #tpu.dimension_semantics<arbitrary>], iteration_bounds = array<i64: 2, 1>, scalar_prefetch = 0 : i64, scratch_operands = 0 : i64, tpu.core_type = #tpu.core_type<tc>, window_params = [{transform_indices = @transform_0, window_bounds = array<i64: 1, 4, 2, 128>}, {transform_indices = @transform_1, window_bounds = array<i64: 1, 1, 2, 128>}, {transform_indices = @transform_2, window_bounds = array<i64: 1, 4, 128>}, {transform_indices = @transform_3, window_bounds = array<i64: 1, 4, 128>}, {transform_indices = @transform_4, window_bounds = array<i64: 1, 4, 128>}]} {
    %c0_i32 = arith.constant 0 : i32
    %0 = arith.cmpi eq, %arg1, %c0_i32 : i32
    %1 = arith.extui %0 : i1 to i32
    %c0_i32_0 = arith.constant 0 : i32
    %2 = arith.cmpi ne, %1, %c0_i32_0 : i32
    scf.if %2 {
      %cst_51 = arith.constant 0.000000e+00 : f32
      %83 = vector.broadcast %cst_51 : f32 to vector<1x4x128xf32>
      %c0_52 = arith.constant 0 : index
      %c0_53 = arith.constant 0 : index
      %c0_54 = arith.constant 0 : index
      %84 = vector.load %arg4[%c0_52, %c0_53, %c0_54] : memref<1x4x128xf32, #tpu.memory_space<vmem>>, vector<1x4x128xf32>
      tpu.vector_store %arg4[%c0_52, %c0_53, %c0_54], %83 {strides = array<i32>} : memref<1x4x128xf32, #tpu.memory_space<vmem>>, vector<1x4x128xf32>,
      %cst_55 = arith.constant 0.000000e+00 : f32
      %85 = vector.broadcast %cst_55 : f32 to vector<1x4x128xf32>
      %c0_56 = arith.constant 0 : index
      %c0_57 = arith.constant 0 : index
      %c0_58 = arith.constant 0 : index
      %86 = vector.load %arg5[%c0_56, %c0_57, %c0_58] : memref<1x4x128xf32, #tpu.memory_space<vmem>>, vector<1x4x128xf32>
      tpu.vector_store %arg5[%c0_56, %c0_57, %c0_58], %85 {strides = array<i32>} : memref<1x4x128xf32, #tpu.memory_space<vmem>>, vector<1x4x128xf32>,
      %cst_59 = arith.constant 0.000000e+00 : f32
      %87 = vector.broadcast %cst_59 : f32 to vector<1x4x128xf32>
      %c0_60 = arith.constant 0 : index
      %c0_61 = arith.constant 0 : index
      %c0_62 = arith.constant 0 : index
      %88 = vector.load %arg6[%c0_60, %c0_61, %c0_62] : memref<1x4x128xf32, #tpu.memory_space<vmem>>, vector<1x4x128xf32>
      tpu.vector_store %arg6[%c0_60, %c0_61, %c0_62], %87 {strides = array<i32>} : memref<1x4x128xf32, #tpu.memory_space<vmem>>, vector<1x4x128xf32>,
    } else {
    }
    %c0 = arith.constant 0 : index
    %c0_1 = arith.constant 0 : index
    %c0_2 = arith.constant 0 : index
    %c0_3 = arith.constant 0 : index
    %3 = vector.load %arg3[%c0, %c0_1, %c0_2, %c0_3] : memref<1x1x2x128xi8, #tpu.memory_space<vmem>>, vector<1x1x2x128xi8>
    %4 = vector.shape_cast %3 : vector<1x1x2x128xi8> to vector<2x128xi8>
    %5 = arith.extsi %4 : vector<2x128xi8> to vector<2x128xi32>
    %c0_4 = arith.constant 0 : index
    %c0_5 = arith.constant 0 : index
    %c0_6 = arith.constant 0 : index
    %c0_7 = arith.constant 0 : index
    %6 = vector.load %arg2[%c0_4, %c0_5, %c0_6, %c0_7] : memref<1x4x2x128xf32, #tpu.memory_space<vmem>>, vector<1x1x2x128xf32>
    %7 = vector.shape_cast %6 : vector<1x1x2x128xf32> to vector<2x128xf32>
    %c0_i32_8 = arith.constant 0 : i32
    %8 = vector.broadcast %c0_i32_8 : i32 to vector<2x128xi32>
    %9 = arith.cmpi eq, %5, %8 : vector<2x128xi32>
    %cst = arith.constant 0.000000e+00 : f32
    %10 = vector.broadcast %cst : f32 to vector<2x128xf32>
    %11 = arith.select %9, %7, %10 : vector<2x128xi1>, vector<2x128xf32>
    %cst_9 = arith.constant dense<0.000000e+00> : vector<128xf32>
    %12 = vector.multi_reduction <add>, %11, %cst_9 [0] : vector<2x128xf32> to vector<128xf32>
    %13 = vector.shape_cast %12 : vector<128xf32> to vector<1x128xf32>
    %cst_10 = arith.constant dense<0.000000e+00> : vector<128xf32>
    %14 = vector.multi_reduction <add>, %7, %cst_10 [0] : vector<2x128xf32> to vector<128xf32>
    %15 = vector.shape_cast %14 : vector<128xf32> to vector<1x128xf32>
    %16 = arith.extui %9 : vector<2x128xi1> to vector<2x128xi32>
    %17 = arith.sitofp %16 : vector<2x128xi32> to vector<2x128xf32>
    %cst_11 = arith.constant dense<0.000000e+00> : vector<128xf32>
    %18 = vector.multi_reduction <add>, %17, %cst_11 [0] : vector<2x128xf32> to vector<128xf32>
    %19 = vector.shape_cast %18 : vector<128xf32> to vector<1x128xf32>
    %c0_12 = arith.constant 0 : index
    %c1 = arith.constant 1 : index
    %c0_13 = arith.constant 0 : index
    %c0_14 = arith.constant 0 : index
    %20 = vector.load %arg2[%c0_12, %c1, %c0_13, %c0_14] : memref<1x4x2x128xf32, #tpu.memory_space<vmem>>, vector<1x1x2x128xf32>
    %21 = vector.shape_cast %20 : vector<1x1x2x128xf32> to vector<2x128xf32>
    %c1_i32 = arith.constant 1 : i32
    %22 = vector.broadcast %c1_i32 : i32 to vector<2x128xi32>
    %23 = arith.cmpi eq, %5, %22 : vector<2x128xi32>
    %cst_15 = arith.constant 0.000000e+00 : f32
    %24 = vector.broadcast %cst_15 : f32 to vector<2x128xf32>
    %25 = arith.select %23, %21, %24 : vector<2x128xi1>, vector<2x128xf32>
    %cst_16 = arith.constant dense<0.000000e+00> : vector<128xf32>
    %26 = vector.multi_reduction <add>, %25, %cst_16 [0] : vector<2x128xf32> to vector<128xf32>
    %27 = vector.shape_cast %26 : vector<128xf32> to vector<1x128xf32>
    %cst_17 = arith.constant dense<0.000000e+00> : vector<128xf32>
    %28 = vector.multi_reduction <add>, %21, %cst_17 [0] : vector<2x128xf32> to vector<128xf32>
    %29 = vector.shape_cast %28 : vector<128xf32> to vector<1x128xf32>
    %30 = arith.extui %23 : vector<2x128xi1> to vector<2x128xi32>
    %31 = arith.sitofp %30 : vector<2x128xi32> to vector<2x128xf32>
    %cst_18 = arith.constant dense<0.000000e+00> : vector<128xf32>
    %32 = vector.multi_reduction <add>, %31, %cst_18 [0] : vector<2x128xf32> to vector<128xf32>
    %33 = vector.shape_cast %32 : vector<128xf32> to vector<1x128xf32>
    %c0_19 = arith.constant 0 : index
    %c2 = arith.constant 2 : index
    %c0_20 = arith.constant 0 : index
    %c0_21 = arith.constant 0 : index
    %34 = vector.load %arg2[%c0_19, %c2, %c0_20, %c0_21] : memref<1x4x2x128xf32, #tpu.memory_space<vmem>>, vector<1x1x2x128xf32>
    %35 = vector.shape_cast %34 : vector<1x1x2x128xf32> to vector<2x128xf32>
    %c2_i32 = arith.constant 2 : i32
    %36 = vector.broadcast %c2_i32 : i32 to vector<2x128xi32>
    %37 = arith.cmpi eq, %5, %36 : vector<2x128xi32>
    %cst_22 = arith.constant 0.000000e+00 : f32
    %38 = vector.broadcast %cst_22 : f32 to vector<2x128xf32>
    %39 = arith.select %37, %35, %38 : vector<2x128xi1>, vector<2x128xf32>
    %cst_23 = arith.constant dense<0.000000e+00> : vector<128xf32>
    %40 = vector.multi_reduction <add>, %39, %cst_23 [0] : vector<2x128xf32> to vector<128xf32>
    %41 = vector.shape_cast %40 : vector<128xf32> to vector<1x128xf32>
    %cst_24 = arith.constant dense<0.000000e+00> : vector<128xf32>
    %42 = vector.multi_reduction <add>, %35, %cst_24 [0] : vector<2x128xf32> to vector<128xf32>
    %43 = vector.shape_cast %42 : vector<128xf32> to vector<1x128xf32>
    %44 = arith.extui %37 : vector<2x128xi1> to vector<2x128xi32>
    %45 = arith.sitofp %44 : vector<2x128xi32> to vector<2x128xf32>
    %cst_25 = arith.constant dense<0.000000e+00> : vector<128xf32>
    %46 = vector.multi_reduction <add>, %45, %cst_25 [0] : vector<2x128xf32> to vector<128xf32>
    %47 = vector.shape_cast %46 : vector<128xf32> to vector<1x128xf32>
    %c0_26 = arith.constant 0 : index
    %c3 = arith.constant 3 : index
    %c0_27 = arith.constant 0 : index
    %c0_28 = arith.constant 0 : index
    %48 = vector.load %arg2[%c0_26, %c3, %c0_27, %c0_28] : memref<1x4x2x128xf32, #tpu.memory_space<vmem>>, vector<1x1x2x128xf32>
    %49 = vector.shape_cast %48 : vector<1x1x2x128xf32> to vector<2x128xf32>
    %c3_i32 = arith.constant 3 : i32
    %50 = vector.broadcast %c3_i32 : i32 to vector<2x128xi32>
    %51 = arith.cmpi eq, %5, %50 : vector<2x128xi32>
    %cst_29 = arith.constant 0.000000e+00 : f32
    %52 = vector.broadcast %cst_29 : f32 to vector<2x128xf32>
    %53 = arith.select %51, %49, %52 : vector<2x128xi1>, vector<2x128xf32>
    %cst_30 = arith.constant dense<0.000000e+00> : vector<128xf32>
    %54 = vector.multi_reduction <add>, %53, %cst_30 [0] : vector<2x128xf32> to vector<128xf32>
    %55 = vector.shape_cast %54 : vector<128xf32> to vector<1x128xf32>
    %cst_31 = arith.constant dense<0.000000e+00> : vector<128xf32>
    %56 = vector.multi_reduction <add>, %49, %cst_31 [0] : vector<2x128xf32> to vector<128xf32>
    %57 = vector.shape_cast %56 : vector<128xf32> to vector<1x128xf32>
    %58 = arith.extui %51 : vector<2x128xi1> to vector<2x128xi32>
    %59 = arith.sitofp %58 : vector<2x128xi32> to vector<2x128xf32>
    %cst_32 = arith.constant dense<0.000000e+00> : vector<128xf32>
    %60 = vector.multi_reduction <add>, %59, %cst_32 [0] : vector<2x128xf32> to vector<128xf32>
    %61 = vector.shape_cast %60 : vector<128xf32> to vector<1x128xf32>
    %c0_33 = arith.constant 0 : index
    %c0_34 = arith.constant 0 : index
    %c0_35 = arith.constant 0 : index
    %62 = vector.load %arg4[%c0_33, %c0_34, %c0_35] : memref<1x4x128xf32, #tpu.memory_space<vmem>>, vector<1x4x128xf32>
    %63 = vector.shape_cast %62 : vector<1x4x128xf32> to vector<4x128xf32>
    %64 = tpu.concatenate %13, %27, %41, %55 in 0 : vector<1x128xf32>, vector<1x128xf32>, vector<1x128xf32>, vector<1x128xf32> -> vector<4x128xf32>
    %65 = arith.addf %63, %64 : vector<4x128xf32>
    %c0_36 = arith.constant 0 : index
    %c0_37 = arith.constant 0 : index
    %c0_38 = arith.constant 0 : index
    %66 = vector.load %arg4[%c0_36, %c0_37, %c0_38] : memref<1x4x128xf32, #tpu.memory_space<vmem>>, vector<1x4x128xf32>
    %67 = vector.shape_cast %66 : vector<1x4x128xf32> to vector<4x128xf32>
    %68 = vector.shape_cast %65 : vector<4x128xf32> to vector<1x4x128xf32>
    tpu.vector_store %arg4[%c0_36, %c0_37, %c0_38], %68 {strides = array<i32>} : memref<1x4x128xf32, #tpu.memory_space<vmem>>, vector<1x4x128xf32>,
    %c0_39 = arith.constant 0 : index
    %c0_40 = arith.constant 0 : index
    %c0_41 = arith.constant 0 : index
    %69 = vector.load %arg5[%c0_39, %c0_40, %c0_41] : memref<1x4x128xf32, #tpu.memory_space<vmem>>, vector<1x4x128xf32>
    %70 = vector.shape_cast %69 : vector<1x4x128xf32> to vector<4x128xf32>
    %71 = tpu.concatenate %15, %29, %43, %57 in 0 : vector<1x128xf32>, vector<1x128xf32>, vector<1x128xf32>, vector<1x128xf32> -> vector<4x128xf32>
    %72 = arith.addf %70, %71 : vector<4x128xf32>
    %c0_42 = arith.constant 0 : index
    %c0_43 = arith.constant 0 : index
    %c0_44 = arith.constant 0 : index
    %73 = vector.load %arg5[%c0_42, %c0_43, %c0_44] : memref<1x4x128xf32, #tpu.memory_space<vmem>>, vector<1x4x128xf32>
    %74 = vector.shape_cast %73 : vector<1x4x128xf32> to vector<4x128xf32>
    %75 = vector.shape_cast %72 : vector<4x128xf32> to vector<1x4x128xf32>
    tpu.vector_store %arg5[%c0_42, %c0_43, %c0_44], %75 {strides = array<i32>} : memref<1x4x128xf32, #tpu.memory_space<vmem>>, vector<1x4x128xf32>,
    %c0_45 = arith.constant 0 : index
    %c0_46 = arith.constant 0 : index
    %c0_47 = arith.constant 0 : index
    %76 = vector.load %arg6[%c0_45, %c0_46, %c0_47] : memref<1x4x128xf32, #tpu.memory_space<vmem>>, vector<1x4x128xf32>
    %77 = vector.shape_cast %76 : vector<1x4x128xf32> to vector<4x128xf32>
    %78 = tpu.concatenate %19, %33, %47, %61 in 0 : vector<1x128xf32>, vector<1x128xf32>, vector<1x128xf32>, vector<1x128xf32> -> vector<4x128xf32>
    %79 = arith.addf %77, %78 : vector<4x128xf32>
    %c0_48 = arith.constant 0 : index
    %c0_49 = arith.constant 0 : index
    %c0_50 = arith.constant 0 : index
    %80 = vector.load %arg6[%c0_48, %c0_49, %c0_50] : memref<1x4x128xf32, #tpu.memory_space<vmem>>, vector<1x4x128xf32>
    %81 = vector.shape_cast %80 : vector<1x4x128xf32> to vector<4x128xf32>
    %82 = vector.shape_cast %79 : vector<4x128xf32> to vector<1x4x128xf32>
    tpu.vector_store %arg6[%c0_48, %c0_49, %c0_50], %82 {strides = array<i32>} : memref<1x4x128xf32, #tpu.memory_space<vmem>>, vector<1x4x128xf32>,
    return
  }
  func.func @transform_0(%arg0: i32, %arg1: i32) -> (i32, i32, i32, i32) {
    %c0_i32 = arith.constant 0 : i32
    %c0_i32_0 = arith.constant 0 : i32
    %c0_i32_1 = arith.constant 0 : i32
    return %arg0, %c0_i32, %arg1, %c0_i32_0 : i32, i32, i32, i32
  }
  func.func @transform_1(%arg0: i32, %arg1: i32) -> (i32, i32, i32, i32) {
    %c0_i32 = arith.constant 0 : i32
    %c0_i32_0 = arith.constant 0 : i32
    %c0_i32_1 = arith.constant 0 : i32
    return %arg0, %c0_i32, %arg1, %c0_i32_0 : i32, i32, i32, i32
  }
  func.func @transform_2(%arg0: i32, %arg1: i32) -> (i32, i32, i32) {
    %c0_i32 = arith.constant 0 : i32
    %c0_i32_0 = arith.constant 0 : i32
    %c0_i32_1 = arith.constant 0 : i32
    return %arg0, %c0_i32, %c0_i32_0 : i32, i32, i32
  }
  func.func @transform_3(%arg0: i32, %arg1: i32) -> (i32, i32, i32) {
    %c0_i32 = arith.constant 0 : i32
    %c0_i32_0 = arith.constant 0 : i32
    %c0_i32_1 = arith.constant 0 : i32
    return %arg0, %c0_i32, %c0_i32_0 : i32, i32, i32
  }
  func.func @transform_4(%arg0: i32, %arg1: i32) -> (i32, i32, i32) {
    %c0_i32 = arith.constant 0 : i32
    %c0_i32_0 = arith.constant 0 : i32
    %c0_i32_1 = arith.constant 0 : i32
    return %arg0, %c0_i32, %c0_i32_0 : i32, i32, i32
  }
}

</mosaic_0001>

<llo_original>
// kernel: tpu_custom_call.1
$region0: #{tpu_custom_call.1}
  #allocation0 [shape = 'u32[]', space=smem, size = 0x4, offset = 0x4, fixed_abs, tag = 'smem constant byte address 0x4 - core index']
  #allocation1 [shape = 'u32[144,128]{1,0:T(1,128)}', space=vmem, size = 0x12000, scoped, tag = 'internal scratch']
  %s0 = inlined_call_operand.hbm [shape: f32[2,4,2,128], index: 0, kind: input, shape index: {}]
  %s1 = inlined_call_operand.vmem [shape: s8[2,1,2,128], index: 1, kind: input, shape index: {}]
  %s2 = inlined_call_operand.hbm [shape: f32[2,4,128], index: 2, kind: output, shape index: {0}]
  %s3 = inlined_call_operand.hbm [shape: f32[2,4,128], index: 3, kind: output, shape index: {1}]
  %s4 = inlined_call_operand.hbm [shape: f32[2,4,128], index: 4, kind: output, shape index: {2}]
  %5 = xla_tuple %s2, %s3, %s4
  %s6 = sld [smem:[#allocation0]]
  $region65: #{tpu_custom_call.1} parent=0
    _
  %s8 = ssub.s32 1, %s6
  %s9 = scalar_select 0, %s8, %s6
  $region1: #{tpu_custom_call.1} parent=0
    #allocation2 [shape = 'u8[8192]{0}', space=vmem, size = 0x2000, scoped, tag = 'input window, operand 0']
    #allocation3 [shape = 's32[2]{0}', space=sflag, size = 0x8, scoped, tag = 'scoped memory for tpu_custom_call.1']
    #allocation4 [shape = 's32[2]{0}', space=sflag, size = 0x8, scoped, tag = 'scoped memory for tpu_custom_call.1']
    #allocation5 [shape = 'u8[4096]{0}', space=vmem, size = 0x1000, scoped, tag = 'output window, operand 0']
    #allocation6 [shape = 'u8[4096]{0}', space=vmem, size = 0x1000, scoped, tag = 'output window, operand 1']
    #allocation7 [shape = 's32[2]{0}', space=sflag, size = 0x8, scoped, tag = 'scoped memory for tpu_custom_call.1']
    #allocation8 [shape = 'u8[4096]{0}', space=vmem, size = 0x1000, scoped, tag = 'output window, operand 2']
    %10 = vsyncpa [#allocation3], 0
    %s11 = scalar_lea.sflag [#allocation3], 1
    %12 = vsyncpa %s11, 0
    %13 = vsyncpa [#allocation4], 0
    %s14 = scalar_lea.sflag [#allocation4], 1
    %15 = vsyncpa %s14, 0
    %16 = vsyncpa [#allocation7], 0
    %s17 = scalar_lea.sflag [#allocation7], 1
    %18 = vsyncpa %s17, 0
    loop: start=0, step=1, limit=4
    $region2: #{tpu_custom_call.1} parent=1 // loop_pre_header
      _
    $region3: #{tpu_custom_call.1} parent=1 // loop_header
      %s20 = sphi 0, %s24
      %p21 = scmp.ge.s32.totalorder %s20, 4
      %s27 = sphi 0, %s39
      %s28 = sphi 0, %s35
      %s29 = sphi 0, %s27
      %s30 = sphi 0, %s28
      %s31 = sphi 0, %s29
      %s32 = sphi 0, %s30
      %s44 = sphi 0, %s46
      %s47 = sphi 0, %s44
      %s48 = sphi 0, %s47
      %s64 = sphi 0, %s48
      %s72 = sphi 0, %s74
      %s75 = sphi 0, %s72
      %s76 = sphi 0, %s75
      %s92 = sphi 0, %s76
      %s98 = sphi 0, %s100
      %s101 = sphi 0, %s98
      %s102 = sphi 0, %s101
      %s118 = sphi 0, %s102
      %s124 = sphi 0, %s126
      %s127 = sphi 0, %s124
      %s128 = sphi 0, %s127
      %s144 = sphi 0, %s128
      %s150 = sphi 0, %s152
      %s153 = sphi 0, %s150
      %s154 = sphi 0, %s153
      %s170 = sphi 0, %s154
    $region4: #{tpu_custom_call.1} parent=1 // loop_header_branch
      %23 = sbr.rel (%p21) target = $region8
    $region5: #{tpu_custom_call.1} parent=1 // loop_body
      %s25 = ssub.s32 %s20, 1
      %s26 = ssub.s32 %s20, 2
      %s33 = sadd.s32 1, %s28
      %p34 = scmp.ge.s32.totalorder %s33, 1
      %s35 = scalar_select %p34, 0, %s33
      %s36 = sadd.s32 1, %s27
      %s37 = scalar_select %p34, %s36, %s27
      %p38 = scmp.ge.s32.totalorder %s37, 2
      %s39 = scalar_select %p38, 0, %s37
      %s40 = ssub.s32 %s27, %s39
      %s41 = ssub.s32 %s28, %s35
      %s42 = sor.u32 %s40, %s41
      %p43 = scmp.eq.s32.totalorder %s42, 0
      %s45 = sadd.s32 %s44, 1
      %s46 = scalar_select %p43, %s44, %s45
      %p49 = pneg %p43
      %p50 = scmp.eq.s32.totalorder %s20, 1
      %p51 = por %p49, %p50
      %p52 = scmp.ne.s32.totalorder %s44, %s47
      %p53 = scmp.eq.s32.totalorder %s20, 0
      %p54 = por %p52, %p53
      %p55 = scmp.ne.s32.totalorder %s44, %s47
      %p56 = scmp.eq.s32.totalorder %s25, 1
      %p57 = por %p55, %p56
      %p58 = scmp.ne.s32.totalorder %s47, %s48
      %p59 = scmp.eq.s32.totalorder %s25, 0
      %p60 = por %p58, %p59
      %p61 = scmp.ne.s32.totalorder %s47, %s48
      %p62 = scmp.eq.s32.totalorder %s26, 1
      %p63 = por %p61, %p62
      %p65 = scmp.ne.s32.totalorder %s48, %s64
      %p66 = scmp.eq.s32.totalorder %s26, 0
      %p67 = por %p65, %p66
      %s68 = ssub.s32 %s27, %s39
      %s69 = ssub.s32 %s28, %s35
      %s70 = sor.u32 %s68, %s69
      %p71 = scmp.eq.s32.totalorder %s70, 0
      %s73 = sadd.s32 %s72, 1
      %s74 = scalar_select %p71, %s72, %s73
      %p77 = pneg %p71
      %p78 = scmp.eq.s32.totalorder %s20, 1
      %p79 = por %p77, %p78
      %p80 = scmp.ne.s32.totalorder %s72, %s75
      %p81 = scmp.eq.s32.totalorder %s20, 0
      %p82 = por %p80, %p81
      %p83 = scmp.ne.s32.totalorder %s72, %s75
      %p84 = scmp.eq.s32.totalorder %s25, 1
      %p85 = por %p83, %p84
      %p86 = scmp.ne.s32.totalorder %s75, %s76
      %p87 = scmp.eq.s32.totalorder %s25, 0
      %p88 = por %p86, %p87
      %p89 = scmp.ne.s32.totalorder %s75, %s76
      %p90 = scmp.eq.s32.totalorder %s26, 1
      %p91 = por %p89, %p90
      %p93 = scmp.ne.s32.totalorder %s76, %s92
      %p94 = scmp.eq.s32.totalorder %s26, 0
      %p95 = por %p93, %p94
      %s96 = ssub.s32 %s27, %s39
      %p97 = scmp.eq.s32.totalorder %s96, 0
      %s99 = sadd.s32 %s98, 1
      %s100 = scalar_select %p97, %s98, %s99
      %p103 = pneg %p97
      %p104 = scmp.eq.s32.totalorder %s20, 1
      %p105 = por %p103, %p104
      %p106 = scmp.ne.s32.totalorder %s98, %s101
      %p107 = scmp.eq.s32.totalorder %s20, 0
      %p108 = por %p106, %p107
      %p109 = scmp.ne.s32.totalorder %s98, %s101
      %p110 = scmp.eq.s32.totalorder %s25, 1
      %p111 = por %p109, %p110
      %p112 = scmp.ne.s32.totalorder %s101, %s102
      %p113 = scmp.eq.s32.totalorder %s25, 0
      %p114 = por %p112, %p113
      %p115 = scmp.ne.s32.totalorder %s101, %s102
      %p116 = scmp.eq.s32.totalorder %s26, 1
      %p117 = por %p115, %p116
      %p119 = scmp.ne.s32.totalorder %s102, %s118
      %p120 = scmp.eq.s32.totalorder %s26, 0
      %p121 = por %p119, %p120
      %s122 = ssub.s32 %s27, %s39
      %p123 = scmp.eq.s32.totalorder %s122, 0
      %s125 = sadd.s32 %s124, 1
      %s126 = scalar_select %p123, %s124, %s125
      %p129 = pneg %p123
      %p130 = scmp.eq.s32.totalorder %s20, 1
      %p131 = por %p129, %p130
      %p132 = scmp.ne.s32.totalorder %s124, %s127
      %p133 = scmp.eq.s32.totalorder %s20, 0
      %p134 = por %p132, %p133
      %p135 = scmp.ne.s32.totalorder %s124, %s127
      %p136 = scmp.eq.s32.totalorder %s25, 1
      %p137 = por %p135, %p136
      %p138 = scmp.ne.s32.totalorder %s127, %s128
      %p139 = scmp.eq.s32.totalorder %s25, 0
      %p140 = por %p138, %p139
      %p141 = scmp.ne.s32.totalorder %s127, %s128
      %p142 = scmp.eq.s32.totalorder %s26, 1
      %p143 = por %p141, %p142
      %p145 = scmp.ne.s32.totalorder %s128, %s144
      %p146 = scmp.eq.s32.totalorder %s26, 0
      %p147 = por %p145, %p146
      %s148 = ssub.s32 %s27, %s39
      %p149 = scmp.eq.s32.totalorder %s148, 0
      %s151 = sadd.s32 %s150, 1
      %s152 = scalar_select %p149, %s150, %s151
      %p155 = pneg %p149
      %p156 = scmp.eq.s32.totalorder %s20, 1
      %p157 = por %p155, %p156
      %p158 = scmp.ne.s32.totalorder %s150, %s153
      %p159 = scmp.eq.s32.totalorder %s20, 0
      %p160 = por %p158, %p159
      %p161 = scmp.ne.s32.totalorder %s150, %s153
      %p162 = scmp.eq.s32.totalorder %s25, 1
      %p163 = por %p161, %p162
      %p164 = scmp.ne.s32.totalorder %s153, %s154
      %p165 = scmp.eq.s32.totalorder %s25, 0
      %p166 = por %p164, %p165
      %p167 = scmp.ne.s32.totalorder %s153, %s154
      %p168 = scmp.eq.s32.totalorder %s26, 1
      %p169 = por %p167, %p168
      %p171 = scmp.ne.s32.totalorder %s154, %s170
      %p172 = scmp.eq.s32.totalorder %s26, 0
      %p173 = por %p171, %p172
      %p174 = scmp.le.s32.totalorder 1, %s20
      %p175 = scmp.lt.s32.totalorder %s20, 3
      %p176 = pnand %p174, %p175
      %p177 = pneg %p176
      // Predicated region
      $region9: #{tpu_custom_call.1} parent=5 // pred_check
        _
      $region10: #{tpu_custom_call.1} parent=5 // pred_check_branch
        %179 = sbr.rel (%p176) target = $region12
      $region11: #{tpu_custom_call.1} parent=5 // pred_region
        %s180 = ssub.s32 %s20, 1
      $region12: #{tpu_custom_call.1} parent=5 // pred_fallthru
        _
      %p181 = scmp.lt.s32.totalorder %s20, 2
      // Predicated region
      $region13: #{tpu_custom_call.1} parent=5 // pred_check
        %p182 = pneg %p181
      $region14: #{tpu_custom_call.1} parent=5 // pred_check_branch
        %184 = sbr.rel (%p182) target = $region16
      $region15: #{tpu_custom_call.1} parent=5 // pred_region
        // Predicated region
        $region17: #{tpu_custom_call.1} parent=15 // pred_check
          %p185 = pneg %p54
        $region18: #{tpu_custom_call.1} parent=15 // pred_check_branch
          %187 = sbr.rel (%p185) target = $region20
        $region19: #{tpu_custom_call.1} parent=15 // pred_region
          %s188 = sand.u32 %s44, 1
          %s189 = scalar_lea.sflag [#allocation3], %s188
          %s190 = sand.u32 %s44, 1
          %s191 = smul.addr %s190, 8
          %s192 = scalar_lea.vmem [#allocation2], %s191
          %s194 = ssub.s32 128, 128
          %195 = vsyncadd %s189, %s194
          %s196 = smul.addr %s27, 4
          %s197 = sadd.s32 %s28, %s196
          %s198 = smul.addr %s197, 32
          %s199 = scalar_lea.hbm %s0, %s198
          %s200 = sshll.u32 %s192, 4
          %s201 = int_to_ptr.vmem [resolvable:$true] %s200
          %206 = dma.hbm_to_vmem [thread:$0]  %s199, 128, %s201, %s189, 32, 32, 2
        $region20: #{tpu_custom_call.1} parent=15 // pred_fallthru
          _
        // Predicated region
        $region21: #{tpu_custom_call.1} parent=15 // pred_check
          %p207 = pneg %p82
        $region22: #{tpu_custom_call.1} parent=15 // pred_check_branch
          %209 = sbr.rel (%p207) target = $region24
        $region23: #{tpu_custom_call.1} parent=15 // pred_region
          %p210 = scmp.lt.s32.totalorder %s27, 1
          %s211 = scalar_select %p210, %s27, 1
          %p212 = scmp.lt.s32.totalorder %s28, 0
          %s213 = scalar_select %p212, %s28, 0
          %s214 = sadd.s32 %s213, %s211
          %s215 = scalar_lea.vmem %s1, %s214
        $region24: #{tpu_custom_call.1} parent=15 // pred_fallthru
          _
      $region16: #{tpu_custom_call.1} parent=5 // pred_fallthru
        _
      %p216 = scmp.le.s32.totalorder 1, %s20
      %p217 = scmp.lt.s32.totalorder %s20, 3
      %p218 = pnand %p216, %p217
      %p219 = pneg %p218
      // Predicated region
      $region25: #{tpu_custom_call.1} parent=5 // pred_check
        _
      $region26: #{tpu_custom_call.1} parent=5 // pred_check_branch
        %221 = sbr.rel (%p218) target = $region28
      $region27: #{tpu_custom_call.1} parent=5 // pred_region
        %s222 = ssub.s32 %s20, 1
        %s223 = sand.u32 %s47, 1
        %s224 = scalar_lea.sflag [#allocation3], %s223
        %s225 = sand.u32 %s47, 1
        %s226 = smul.addr %s225, 8
        %s227 = scalar_lea.vmem [#allocation2], %s226
        // Predicated region
        $region29: #{tpu_custom_call.1} parent=27 // pred_check
          %p228 = pneg %p60
        $region30: #{tpu_custom_call.1} parent=27 // pred_check_branch
          %230 = sbr.rel (%p228) target = $region32
        $region31: #{tpu_custom_call.1} parent=27 // pred_region
          %231 = dma.done %s224, 128
        $region32: #{tpu_custom_call.1} parent=27 // pred_fallthru
          _
        %s232 = sand.u32 %s47, 1
        %s233 = scalar_lea.sflag [#allocation3], %s232
        %s234 = sand.u32 %s47, 1
        %s235 = smul.addr %s234, 8
        %s236 = scalar_lea.vmem [#allocation2], %s235
        %p237 = pneg %p60
        %p238 = pneg %p57
        %p239 = scmp.lt.s32.totalorder %s29, 1
        %s240 = scalar_select %p239, %s29, 1
        %p241 = scmp.lt.s32.totalorder %s30, 0
        %s242 = scalar_select %p241, %s30, 0
        %s243 = sadd.s32 %s242, %s240
        %s244 = scalar_lea.vmem %s1, %s243
        %p245 = pneg %p88
        %p246 = pneg %p85
        %p247 = pneg %p114
        %p248 = pneg %p111
        %s249 = sand.u32 %s101, 1
        %s250 = scalar_lea.sflag [#allocation4], %s249
        %s251 = sand.u32 %s101, 1
        %s252 = smul.addr %s251, 4
        %s253 = scalar_lea.vmem [#allocation5], %s252
        %p254 = pneg %p140
        %p255 = pneg %p137
        %s256 = sand.u32 %s25, 1
        %s257 = scalar_lea.sflag [#allocation7], %s256
        %s258 = sand.u32 %s127, 1
        %s259 = smul.addr %s258, 4
        %s260 = scalar_lea.vmem [#allocation6], %s259
        %p261 = pneg %p166
        %p262 = pneg %p163
        %s263 = sand.u32 %s25, 1
        %s264 = scalar_lea.sflag [#allocation7], %s263
        %s265 = sand.u32 %s153, 1
        %s266 = smul.addr %s265, 4
        %s267 = scalar_lea.vmem [#allocation8], %s266
        %p268 = scmp.lt.s32.totalorder %s29, 1
        %s269 = scalar_select %p268, %s29, 1
        %p270 = scmp.lt.s32.totalorder %s30, 0
        %s271 = scalar_select %p270, %s30, 0
        %s272 = sadd.s32 %s271, %s269
        %s273 = scalar_lea.vmem %s1, %s272
        %p274 = scmp.eq.s32.totalorder %s30, 0
        // Predicated region
        $region33: #{tpu_custom_call.1} parent=27 // pred_check
          %p275 = pneg %p274
        $region34: #{tpu_custom_call.1} parent=27 // pred_check_branch
          %277 = sbr.rel (%p275) target = $region36
        $region35: #{tpu_custom_call.1} parent=27 // pred_region
          %278 = vst [vmem:[%s253] sm:$0xf] 0.0
          %279 = vst [vmem:[%s260] sm:$0xf] 0.0
          %280 = vst [vmem:[%s267] sm:$0xf] 0.0
        $region36: #{tpu_custom_call.1} parent=27 // pred_fallthru
          _
        %v281 = vld [vmem:[%s273] sm:$0x1]
        %v282 = vunpack.c.0.s8 %v281
        %v283 = vld [vmem:[%s227] sm:$0x3]
        %vm284 = vcmp.eq.s32.totalorder %v282, 0
        %v285 = vsel %vm284, %v283, 0.0
        %vm286 = vcmask 1041408
        %v287 = vsel %vm286, %v285, 0.0
        %v288 = vrot.slane %v287, 4
        %v289 = vadd.f32 %v287, %v288
        %v290 = vrot.slane %v289, 2
        %v291 = vadd.f32 %v289, %v290
        %v292 = vrot.slane %v291, 1
        %v293 = vadd.f32 %v291, %v292
        %v294 = vsel %vm286, %v283, 0.0
        %v295 = vrot.slane %v294, 4
        %v296 = vadd.f32 %v294, %v295
        %v297 = vrot.slane %v296, 2
        %v298 = vadd.f32 %v296, %v297
        %v299 = vrot.slane %v298, 1
        %v300 = vadd.f32 %v298, %v299
        %v301 = vsel %vm284, 1, 0
        %v302 = vcvt.s32.f32 %v301
        %v303 = vsel %vm286, %v302, 0.0
        %v304 = vrot.slane %v303, 4
        %v305 = vadd.f32 %v303, %v304
        %v306 = vrot.slane %v305, 2
        %v307 = vadd.f32 %v305, %v306
        %v308 = vrot.slane %v307, 1
        %v309 = vadd.f32 %v307, %v308
        %s310 = scalar_lea.vmem %s227, 2 [#allocation2]
        %v311 = vld [vmem:[%s310] sm:$0x3]
        %vm312 = vcmp.eq.s32.totalorder %v282, 1
        %v313 = vsel %vm312, %v311, 0.0
        %v314 = vsel %vm286, %v313, 0.0
        %v315 = vrot.slane %v314, 4
        %v316 = vadd.f32 %v314, %v315
        %v317 = vrot.slane %v316, 2
        %v318 = vadd.f32 %v316, %v317
        %v319 = vrot.slane %v318, 1
        %v320 = vadd.f32 %v318, %v319
        %v321 = vsel %vm286, %v311, 0.0
        %v322 = vrot.slane %v321, 4
        %v323 = vadd.f32 %v321, %v322
        %v324 = vrot.slane %v323, 2
        %v325 = vadd.f32 %v323, %v324
        %v326 = vrot.slane %v325, 1
        %v327 = vadd.f32 %v325, %v326
        %v328 = vsel %vm312, 1, 0
        %v329 = vcvt.s32.f32 %v328
        %v330 = vsel %vm286, %v329, 0.0
        %v331 = vrot.slane %v330, 4
        %v332 = vadd.f32 %v330, %v331
        %v333 = vrot.slane %v332, 2
        %v334 = vadd.f32 %v332, %v333
        %v335 = vrot.slane %v334, 1
        %v336 = vadd.f32 %v334, %v335
        %s337 = scalar_lea.vmem %s227, 4 [#allocation2]
        %v338 = vld [vmem:[%s337] sm:$0x3]
        %vm339 = vcmp.eq.s32.totalorder %v282, 2
        %v340 = vsel %vm339, %v338, 0.0
        %v341 = vsel %vm286, %v340, 0.0
        %v342 = vrot.slane %v341, 4
        %v343 = vadd.f32 %v341, %v342
        %v344 = vrot.slane %v343, 2
        %v345 = vadd.f32 %v343, %v344
        %v346 = vrot.slane %v345, 1
        %v347 = vadd.f32 %v345, %v346
        %v348 = vsel %vm286, %v338, 0.0
        %v349 = vrot.slane %v348, 4
        %v350 = vadd.f32 %v348, %v349
        %v351 = vrot.slane %v350, 2
        %v352 = vadd.f32 %v350, %v351
        %v353 = vrot.slane %v352, 1
        %v354 = vadd.f32 %v352, %v353
        %v355 = vsel %vm339, 1, 0
        %v356 = vcvt.s32.f32 %v355
        %v357 = vsel %vm286, %v356, 0.0
        %v358 = vrot.slane %v357, 4
        %v359 = vadd.f32 %v357, %v358
        %v360 = vrot.slane %v359, 2
        %v361 = vadd.f32 %v359, %v360
        %v362 = vrot.slane %v361, 1
        %v363 = vadd.f32 %v361, %v362
        %s364 = scalar_lea.vmem %s227, 6 [#allocation2]
        %v365 = vld [vmem:[%s364] sm:$0x3]
        %vm366 = vcmp.eq.s32.totalorder %v282, 3
        %v367 = vsel %vm366, %v365, 0.0
        %v368 = vsel %vm286, %v367, 0.0
        %v369 = vrot.slane %v368, 4
        %v370 = vadd.f32 %v368, %v369
        %v371 = vrot.slane %v370, 2
        %v372 = vadd.f32 %v370, %v371
        %v373 = vrot.slane %v372, 1
        %v374 = vadd.f32 %v372, %v373
        %v375 = vsel %vm286, %v365, 0.0
        %v376 = vrot.slane %v375, 4
        %v377 = vadd.f32 %v375, %v376
        %v378 = vrot.slane %v377, 2
        %v379 = vadd.f32 %v377, %v378
        %v380 = vrot.slane %v379, 1
        %v381 = vadd.f32 %v379, %v380
        %v382 = vsel %vm366, 1, 0
        %v383 = vcvt.s32.f32 %v382
        %v384 = vsel %vm286, %v383, 0.0
        %v385 = vrot.slane %v384, 4
        %v386 = vadd.f32 %v384, %v385
        %v387 = vrot.slane %v386, 2
        %v388 = vadd.f32 %v386, %v387
        %v389 = vrot.slane %v388, 1
        %v390 = vadd.f32 %v388, %v389
        %v391 = vld [vmem:[%s253] sm:$0xf]
        %vm392 = vcmask 1040384
        %v393 = vsel %vm392, %v293, %v320
        %v394 = vsel %vm286, %v393, %v347
        %vm395 = vcmask 1042432
        %v396 = vsel %vm395, %v394, %v374
        %v397 = vadd.f32 %v391, %v396
        %398 = vst [vmem:[%s253] sm:$0xf] %v397
        %v399 = vld [vmem:[%s260] sm:$0xf]
        %v400 = vsel %vm392, %v300, %v327
        %v401 = vsel %vm286, %v400, %v354
        %v402 = vsel %vm395, %v401, %v381
        %v403 = vadd.f32 %v399, %v402
        %404 = vst [vmem:[%s260] sm:$0xf] %v403
        %v405 = vld [vmem:[%s267] sm:$0xf]
        %v406 = vsel %vm392, %v309, %v336
        %v407 = vsel %vm286, %v406, %v363
        %v408 = vsel %vm395, %v407, %v390
        %v409 = vadd.f32 %v405, %v408
        %410 = vst [vmem:[%s267] sm:$0xf] %v409
        %s411 = sand.u32 %s101, 1
        %s412 = scalar_lea.sflag [#allocation4], %s411
        %s413 = sand.u32 %s101, 1
        %s414 = smul.addr %s413, 4
        %s415 = scalar_lea.vmem [#allocation5], %s414
        %s416 = sand.u32 %s25, 1
        %s417 = scalar_lea.sflag [#allocation7], %s416
        %s418 = sand.u32 %s127, 1
        %s419 = smul.addr %s418, 4
        %s420 = scalar_lea.vmem [#allocation6], %s419
        %s421 = sand.u32 %s25, 1
        %s422 = scalar_lea.sflag [#allocation7], %s421
        %s423 = sand.u32 %s153, 1
        %s424 = smul.addr %s423, 4
        %s425 = scalar_lea.vmem [#allocation8], %s424
        // Predicated region
        $region37: #{tpu_custom_call.1} parent=27 // pred_check
          %p426 = pneg %p111
        $region38: #{tpu_custom_call.1} parent=27 // pred_check_branch
          %428 = sbr.rel (%p426) target = $region40
        $region39: #{tpu_custom_call.1} parent=27 // pred_region
          %s430 = ssub.s32 64, 64
          %431 = vsyncadd %s412, %s430
          %s432 = smul.addr %s29, 64
          %s433 = scalar_lea.hbm %s2, %s432
          %s435 = sshll.u32 %s415, 4
          %s436 = int_to_ptr.vmem [resolvable:$true] %s435
          %438 = dma.vmem_to_hbm [thread:$0]  %s436, 64, %s433, %s412
        $region40: #{tpu_custom_call.1} parent=27 // pred_fallthru
          _
        // Predicated region
        $region41: #{tpu_custom_call.1} parent=27 // pred_check
          %p439 = pneg %p137
        $region42: #{tpu_custom_call.1} parent=27 // pred_check_branch
          %441 = sbr.rel (%p439) target = $region44
        $region43: #{tpu_custom_call.1} parent=27 // pred_region
          %s443 = ssub.s32 64, 64
          %444 = vsyncadd %s417, %s443
          %s445 = smul.addr %s29, 64
          %s446 = scalar_lea.hbm %s3, %s445
          %s448 = sshll.u32 %s420, 4
          %s449 = int_to_ptr.vmem [resolvable:$true] %s448
          %451 = dma.vmem_to_hbm [thread:$0]  %s449, 64, %s446, %s417
        $region44: #{tpu_custom_call.1} parent=27 // pred_fallthru
          _
        // Predicated region
        $region45: #{tpu_custom_call.1} parent=27 // pred_check
          %p452 = pneg %p163
        $region46: #{tpu_custom_call.1} parent=27 // pred_check_branch
          %454 = sbr.rel (%p452) target = $region48
        $region47: #{tpu_custom_call.1} parent=27 // pred_region
          %s456 = ssub.s32 64, 64
          %457 = vsyncadd %s422, %s456
          %s458 = smul.addr %s29, 64
          %s459 = scalar_lea.hbm %s4, %s458
          %s461 = sshll.u32 %s425, 4
          %s462 = int_to_ptr.vmem [resolvable:$true] %s461
          %464 = dma.vmem_to_hbm [thread:$0]  %s462, 64, %s459, %s422
        $region48: #{tpu_custom_call.1} parent=27 // pred_fallthru
          _
      $region28: #{tpu_custom_call.1} parent=5 // pred_fallthru
        _
      %p465 = scmp.le.s32.totalorder 2, %s20
      // Predicated region
      $region49: #{tpu_custom_call.1} parent=5 // pred_check
        %p466 = pneg %p465
      $region50: #{tpu_custom_call.1} parent=5 // pred_check_branch
        %468 = sbr.rel (%p466) target = $region52
      $region51: #{tpu_custom_call.1} parent=5 // pred_region
        %s469 = ssub.s32 %s20, 2
        // Predicated region
        $region53: #{tpu_custom_call.1} parent=51 // pred_check
          %p470 = pneg %p117
        $region54: #{tpu_custom_call.1} parent=51 // pred_check_branch
          %472 = sbr.rel (%p470) target = $region56
        $region55: #{tpu_custom_call.1} parent=51 // pred_region
          %s473 = sand.u32 %s102, 1
          %s474 = scalar_lea.sflag [#allocation4], %s473
          %s475 = sand.u32 %s102, 1
          %s476 = smul.addr %s475, 4
          %s477 = scalar_lea.vmem [#allocation5], %s476
          %478 = dma.done %s474, 64
        $region56: #{tpu_custom_call.1} parent=51 // pred_fallthru
          _
        // Predicated region
        $region57: #{tpu_custom_call.1} parent=51 // pred_check
          %p479 = pneg %p143
        $region58: #{tpu_custom_call.1} parent=51 // pred_check_branch
          %481 = sbr.rel (%p479) target = $region60
        $region59: #{tpu_custom_call.1} parent=51 // pred_region
          %s482 = sand.u32 %s26, 1
          %s483 = scalar_lea.sflag [#allocation7], %s482
          %s484 = sand.u32 %s128, 1
          %s485 = smul.addr %s484, 4
          %s486 = scalar_lea.vmem [#allocation6], %s485
          %487 = dma.done %s483, 64
        $region60: #{tpu_custom_call.1} parent=51 // pred_fallthru
          _
        // Predicated region
        $region61: #{tpu_custom_call.1} parent=51 // pred_check
          %p488 = pneg %p169
        $region62: #{tpu_custom_call.1} parent=51 // pred_check_branch
          %490 = sbr.rel (%p488) target = $region64
        $region63: #{tpu_custom_call.1} parent=51 // pred_region
          %s491 = sand.u32 %s26, 1
          %s492 = scalar_lea.sflag [#allocation7], %s491
          %s493 = sand.u32 %s154, 1
          %s494 = smul.addr %s493, 4
          %s495 = scalar_lea.vmem [#allocation8], %s494
          %496 = dma.done %s492, 64
        $region64: #{tpu_custom_call.1} parent=51 // pred_fallthru
          _
      $region52: #{tpu_custom_call.1} parent=5 // pred_fallthru
        _
    $region6: #{tpu_custom_call.1} parent=1 // loop_footer
      %s24 = sadd.s32 1, %s20
    $region7: #{tpu_custom_call.1} parent=1 // loop_footer_branch
      %19 = sbr.rel target = $region3
    $region8: #{tpu_custom_call.1} parent=1 // loop_exit
      _
    %497 = vsyncpa [#allocation3], 1
    %s498 = scalar_lea.sflag [#allocation3], 1
    %499 = vsyncpa %s498, 1
    %500 = vsyncpa [#allocation4], 1
    %s501 = scalar_lea.sflag [#allocation4], 1
    %502 = vsyncpa %s501, 1
    %503 = vsyncpa [#allocation7], 1
    %s504 = scalar_lea.sflag [#allocation7], 1
    %505 = vsyncpa %s504, 1

</llo_original>
